<compile_context>
chip_gen: v5e
topology: v5e:2x2
jax: 0.10.0
libtpu: 0.0.40
codegen_flags: <defaults>
</compile_context>

<pallas_src>
import jax
import jax.numpy as jnp
from jax.experimental import pallas as pl
from jax.experimental.pallas import tpu as pltpu

_LANE = 128


def _round_up(x, m):
    return (x + m - 1) // m * m


def _mlp_kernel(x_ref, w1_ref, b1_ref, w2_ref, b2_ref, w3_ref, b3_ref, o_ref):
    # Fused forward: 3 MXU matmuls (f32 accumulation) + 2 VPU ReLUs + bias adds.
    x = x_ref[...].astype(w1_ref.dtype)  # in-kernel cast: no wrapper pass over x
    h1 = jnp.dot(x, w1_ref[...], preferred_element_type=jnp.float32) + b1_ref[...]
    h1 = jnp.maximum(h1, 0.0)
    h2 = (
        jnp.dot(h1.astype(w2_ref.dtype), w2_ref[...], preferred_element_type=jnp.float32)
        + b2_ref[...]
    )
    h2 = jnp.maximum(h2, 0.0)
    out = (
        jnp.dot(h2.astype(w3_ref.dtype), w3_ref[...], preferred_element_type=jnp.float32)
        + b3_ref[...]
    )
    o_ref[...] = out.astype(o_ref.dtype)


def prepare_params(params, compute_dtype=jnp.float32):
    """Pad the hidden dim to the 128-lane width and cast weights ONCE (cache the result).

    params: dict w1,b1,w2,b2,w3,b3; weights stored (in_features, out_features),
    biases (1, out_features).  compute_dtype: dtype of the weight matrices inside the
    kernel (jnp.bfloat16 recommended on v5e/v6e/v7x); biases/accumulation stay f32.
    """
    compute_dtype = jnp.dtype(compute_dtype)
    hid = params["w1"].shape[1]
    dpad = _round_up(hid, _LANE) - hid
    w1 = jnp.pad(params["w1"].astype(compute_dtype), ((0, 0), (0, dpad)))
    w2 = jnp.pad(params["w2"].astype(compute_dtype), ((0, dpad), (0, dpad)))
    w3 = jnp.pad(params["w3"].astype(compute_dtype), ((0, dpad), (0, 0)))
    b1 = jnp.pad(params["b1"].astype(jnp.float32), ((0, 0), (0, dpad)))
    b2 = jnp.pad(params["b2"].astype(jnp.float32), ((0, 0), (0, dpad)))
    b3 = params["b3"].astype(jnp.float32)
    return {"w1": w1, "b1": b1, "w2": w2, "b2": b2, "w3": w3, "b3": b3}


def pathfinder_forward(x, prep, *, batch_tile=None, max_batch_tile=1024, x_buffer_count=2):
    """x: (B, input_size) (any float dtype). prep: output of prepare_params()."""
    B, in_size = x.shape
    w1, b1, w2, b2, w3, b3 = (prep[k] for k in ("w1", "b1", "w2", "b2", "w3", "b3"))
    assert w1.shape[0] == in_size, "input_size mismatch between x and prepared params"
    hid_p = w1.shape[1]
    out_size = w3.shape[1]
    compute_dtype = jnp.dtype(w1.dtype)
    out_dtype = x.dtype

    # ---- batch tiling --------------------------------------------------------------
    # bf16 packs 16 rows per sublane group -> align tiles to 16; f32 -> 8.
    sub = 16 if compute_dtype.itemsize == 2 else 8
    b_aligned = _round_up(B, sub)
    if batch_tile is None:
        num_tiles = pl.cdiv(b_aligned, max_batch_tile)
        if num_tiles == 1 and b_aligned >= 64:
            # Guarantee >= 2 balanced grid steps so v7x's 2 TensorCores both get work.
            num_tiles = 2
        batch_tile = _round_up(pl.cdiv(b_aligned, num_tiles), sub)
    else:
        batch_tile = _round_up(int(batch_tile), sub)
    grid_n = pl.cdiv(b_aligned, batch_tile)
    B_full = grid_n * batch_tile  # waste bounded by < grid_n * sub rows

    xp = x if B_full == B else jnp.pad(x, ((0, B_full - B), (0, 0)))

    # ---- cost estimate + VMEM budget -----------------------------------------------
    c_item = compute_dtype.itemsize
    x_item = jnp.dtype(x.dtype).itemsize
    o_item = jnp.dtype(out_dtype).itemsize
    weight_bytes = (in_size * hid_p + hid_p * hid_p + hid_p * out_size) * c_item
    bias_bytes = (2 * hid_p + out_size) * 4
    io_tile_bytes = batch_tile * (in_size * x_item + out_size * o_item)
    inter_bytes = 2 * batch_tile * hid_p * 4  # h1/h2 f32 temporaries
    flops = 2 * B_full * (in_size * hid_p + hid_p * hid_p + hid_p * out_size)
    bytes_accessed = int(
        B_full * in_size * x_item + weight_bytes + bias_bytes + B_full * out_size * o_item
    )
    cost = pl.CostEstimate(flops=int(flops), transcendentals=0, bytes_accessed=bytes_accessed)

    # Weights (constant index_map) are effectively single-buffered; x/out double-buffer.
    vmem_needed = weight_bytes + bias_bytes + 2 * io_tile_bytes + inter_bytes
    try:
        phys_vmem = int(pltpu.get_tpu_info().vmem_capacity_bytes)
    except Exception:
        phys_vmem = 64 * 1024 * 1024  # most conservative (v7x per-TC)
    vmem_limit = int(min(max(int(1.5 * vmem_needed), 8 * 1024 * 1024), int(0.75 * phys_vmem)))

    x_spec_kwargs = {}
    if x_buffer_count != 2:
        # Only useful if the x DMA is still exposed after enlarging tiles.
        x_spec_kwargs["pipeline_mode"] = pl.Buffered(x_buffer_count)

    out_full = pl.pallas_call(
        _mlp_kernel,
        out_shape=jax.ShapeDtypeStruct((B_full, out_size), out_dtype),
        grid_spec=pltpu.PrefetchScalarGridSpec(
            num_scalar_prefetch=0,
            grid=(grid_n,),
            in_specs=[
                # x streamed unpadded in its feature dim (last dim == full array dim).
                pl.BlockSpec((batch_tile, in_size), lambda i: (i, 0), **x_spec_kwargs),
                pl.BlockSpec((in_size, hid_p), lambda i: (0, 0)),   # w1 (resident)
                pl.BlockSpec((1, hid_p), lambda i: (0, 0)),         # b1
                pl.BlockSpec((hid_p, hid_p), lambda i: (0, 0)),     # w2
                pl.BlockSpec((1, hid_p), lambda i: (0, 0)),         # b2
                pl.BlockSpec((hid_p, out_size), lambda i: (0, 0)),  # w3
                pl.BlockSpec((1, out_size), lambda i: (0, 0)),      # b3
            ],
            # Output emitted unpadded (B_full, out_size): tiny masked stores beat
            # streaming a 128-wide, mostly-zero f32 slab + an extra XLA slice copy.
            out_specs=pl.BlockSpec((batch_tile, out_size), lambda i: (i, 0)),
        ),
        compiler_params=pltpu.CompilerParams(
            dimension_semantics=("parallel",),  # megacore-shardable batch axis (v7x)
            vmem_limit_bytes=vmem_limit,
        ),
        cost_estimate=cost,
    )(xp, w1, b1, w2, b2, w3, b3)

    return out_full[:B] if B_full != B else out_full


def init_params(key, input_size, hidden_size, output_size):
    """Mimics torch.nn.Linear default init (uniform +/- 1/sqrt(fan_in)).
    Weights stored as (in_features, out_features); biases as (1, out_features)."""
    ks = jax.random.split(key, 6)

    def lin(kw, kb, fan_in, fan_out):
        bound = 1.0 / jnp.sqrt(jnp.float32(fan_in))
        w = jax.random.uniform(kw, (fan_in, fan_out), jnp.float32, -bound, bound)
        b = jax.random.uniform(kb, (1, fan_out), jnp.float32, -bound, bound)
        return w, b

    w1, b1 = lin(ks[0], ks[1], input_size, hidden_size)
    w2, b2 = lin(ks[2], ks[3], hidden_size, hidden_size)
    w3, b3 = lin(ks[4], ks[5], hidden_size, output_size)
    return {"w1": w1, "b1": b1, "w2": w2, "b2": b2, "w3": w3, "b3": b3}


def reference_forward(x, p):
    h1 = jnp.maximum(x @ p["w1"] + p["b1"], 0.0)
    h2 = jnp.maximum(h1 @ p["w2"] + p["b2"], 0.0)
    return h2 @ p["w3"] + p["b3"]


if __name__ == "__main__":
    # Small shapes consistent with the module: input_size=16, hidden_size=32, output_size=4.
    batch, input_size, hidden_size, output_size = 8, 16, 32, 4

    key = jax.random.PRNGKey(0)
    kx, kp = jax.random.split(key)
    x = jax.random.normal(kx, (batch, input_size), jnp.float32)
    params = init_params(kp, input_size, hidden_size, output_size)

    ref = reference_forward(x, params)

    # f32 path (exact vs reference).  Weights padded/cast ONCE, reused every call.
    prep_f32 = prepare_params(params, jnp.float32)
    fwd_f32 = jax.jit(lambda xx: pathfinder_forward(xx, prep_f32))
    out = jax.block_until_ready(fwd_f32(x))
    assert out.shape == (batch, output_size)
    assert jnp.allclose(out, ref, atol=1e-5, rtol=1e-5)

    # bf16 weight path (native MXU dtype on v5e/v6e/v7x); f32 accumulation, looser tol.
    prep_bf16 = prepare_params(params, jnp.bfloat16)
    out_bf16 = jax.block_until_ready(pathfinder_forward(x, prep_bf16))
    assert out_bf16.shape == (batch, output_size)
    assert jnp.allclose(out_bf16.astype(jnp.float32), ref, atol=1e-1, rtol=5e-2)

    # Larger batch to exercise multi-step grid / v7x two-core path.
    xb = jax.random.normal(kx, (300, input_size), jnp.float32)
    out_b = jax.block_until_ready(pathfinder_forward(xb, prep_f32))
    assert out_b.shape == (300, output_size)
    assert jnp.allclose(out_b, reference_forward(xb, params), atol=1e-5, rtol=1e-5)

    print("KERNEL_OK")
</pallas_src>

<mosaic_0001>
module attributes {stable_mosaic.version = 11 : i64} {
  func.func @_mlp_kernel(%arg0: i32, %arg1: memref<8x16xf32, #tpu.memory_space<vmem>>, %arg2: memref<16x128xf32, #tpu.memory_space<vmem>>, %arg3: memref<1x128xf32, #tpu.memory_space<vmem>>, %arg4: memref<128x128xf32, #tpu.memory_space<vmem>>, %arg5: memref<1x128xf32, #tpu.memory_space<vmem>>, %arg6: memref<128x4xf32, #tpu.memory_space<vmem>>, %arg7: memref<1x4xf32, #tpu.memory_space<vmem>>, %arg8: memref<8x4xf32, #tpu.memory_space<vmem>>) attributes {dimension_semantics = [#tpu.dimension_semantics<parallel>], iteration_bounds = array<i64: 1>, scalar_prefetch = 0 : i64, scratch_operands = 0 : i64, tpu.core_type = #tpu.core_type<tc>, window_params = [{transform_indices = @transform_0, window_bounds = array<i64: 8, 16>}, {pipeline_mode = #tpu.pipeline_mode<synchronous>, transform_indices = @transform_1, window_bounds = array<i64: 16, 128>}, {pipeline_mode = #tpu.pipeline_mode<synchronous>, transform_indices = @transform_2, window_bounds = array<i64: 1, 128>}, {pipeline_mode = #tpu.pipeline_mode<synchronous>, transform_indices = @transform_3, window_bounds = array<i64: 128, 128>}, {pipeline_mode = #tpu.pipeline_mode<synchronous>, transform_indices = @transform_4, window_bounds = array<i64: 1, 128>}, {pipeline_mode = #tpu.pipeline_mode<synchronous>, transform_indices = @transform_5, window_bounds = array<i64: 128, 4>}, {pipeline_mode = #tpu.pipeline_mode<synchronous>, transform_indices = @transform_6, window_bounds = array<i64: 1, 4>}, {transform_indices = @transform_7, window_bounds = array<i64: 8, 4>}]} {
    %c0 = arith.constant 0 : index
    %c0_0 = arith.constant 0 : index
    %0 = vector.load %arg1[%c0, %c0_0] : memref<8x16xf32, #tpu.memory_space<vmem>>, vector<8x16xf32>
    %c0_1 = arith.constant 0 : index
    %c0_2 = arith.constant 0 : index
    %1 = vector.load %arg2[%c0_1, %c0_2] : memref<16x128xf32, #tpu.memory_space<vmem>>, vector<16x128xf32>
    %cst = arith.constant dense<0.000000e+00> : vector<8x128xf32>
    %2 = tpu.matmul %0, %1, %cst {dimension_numbers = #tpu.dot_dimension_numbers<[1], [0], [0], [1], [0, 0, 1, 1], [], []>} : vector<8x16xf32>, vector<16x128xf32>, vector<8x128xf32> -> vector<8x128xf32>
    %c0_3 = arith.constant 0 : index
    %c0_4 = arith.constant 0 : index
    %3 = vector.load %arg3[%c0_3, %c0_4] : memref<1x128xf32, #tpu.memory_space<vmem>>, vector<1x128xf32>
    %4 = vector.broadcast %3 : vector<1x128xf32> to vector<8x128xf32>
    %5 = arith.addf %2, %4 : vector<8x128xf32>
    %cst_5 = arith.constant 0.000000e+00 : f32
    %6 = vector.broadcast %cst_5 : f32 to vector<8x128xf32>
    %7 = arith.maximumf %5, %6 : vector<8x128xf32>
    %c0_6 = arith.constant 0 : index
    %c0_7 = arith.constant 0 : index
    %8 = vector.load %arg4[%c0_6, %c0_7] : memref<128x128xf32, #tpu.memory_space<vmem>>, vector<128x128xf32>
    %cst_8 = arith.constant dense<0.000000e+00> : vector<8x128xf32>
    %9 = tpu.matmul %7, %8, %cst_8 {dimension_numbers = #tpu.dot_dimension_numbers<[1], [0], [0], [1], [0, 0, 1, 1], [], []>} : vector<8x128xf32>, vector<128x128xf32>, vector<8x128xf32> -> vector<8x128xf32>
    %c0_9 = arith.constant 0 : index
    %c0_10 = arith.constant 0 : index
    %10 = vector.load %arg5[%c0_9, %c0_10] : memref<1x128xf32, #tpu.memory_space<vmem>>, vector<1x128xf32>
    %11 = vector.broadcast %10 : vector<1x128xf32> to vector<8x128xf32>
    %12 = arith.addf %9, %11 : vector<8x128xf32>
    %cst_11 = arith.constant 0.000000e+00 : f32
    %13 = vector.broadcast %cst_11 : f32 to vector<8x128xf32>
    %14 = arith.maximumf %12, %13 : vector<8x128xf32>
    %c0_12 = arith.constant 0 : index
    %c0_13 = arith.constant 0 : index
    %15 = vector.load %arg6[%c0_12, %c0_13] : memref<128x4xf32, #tpu.memory_space<vmem>>, vector<128x4xf32>
    %cst_14 = arith.constant dense<0.000000e+00> : vector<8x4xf32>
    %16 = tpu.matmul %14, %15, %cst_14 {dimension_numbers = #tpu.dot_dimension_numbers<[1], [0], [0], [1], [0, 0, 1, 1], [], []>} : vector<8x128xf32>, vector<128x4xf32>, vector<8x4xf32> -> vector<8x4xf32>
    %c0_15 = arith.constant 0 : index
    %c0_16 = arith.constant 0 : index
    %17 = vector.load %arg7[%c0_15, %c0_16] : memref<1x4xf32, #tpu.memory_space<vmem>>, vector<1x4xf32>
    %18 = vector.broadcast %17 : vector<1x4xf32> to vector<8x4xf32>
    %19 = arith.addf %16, %18 : vector<8x4xf32>
    %c0_17 = arith.constant 0 : index
    %c0_18 = arith.constant 0 : index
    %20 = vector.load %arg8[%c0_17, %c0_18] : memref<8x4xf32, #tpu.memory_space<vmem>>, vector<8x4xf32>
    tpu.vector_store %arg8[%c0_17, %c0_18], %19 {strides = array<i32>} : memref<8x4xf32, #tpu.memory_space<vmem>>, vector<8x4xf32>,
    return
  }
  func.func @transform_0(%arg0: i32) -> (i32, i32) {
    %c0_i32 = arith.constant 0 : i32
    %c0_i32_0 = arith.constant 0 : i32
    return %arg0, %c0_i32 : i32, i32
  }
  func.func @transform_1(%arg0: i32) -> (i32, i32) {
    %c0_i32 = arith.constant 0 : i32
    %c0_i32_0 = arith.constant 0 : i32
    %c0_i32_1 = arith.constant 0 : i32
    return %c0_i32, %c0_i32_0 : i32, i32
  }
  func.func @transform_2(%arg0: i32) -> (i32, i32) {
    %c0_i32 = arith.constant 0 : i32
    %c0_i32_0 = arith.constant 0 : i32
    %c0_i32_1 = arith.constant 0 : i32
    return %c0_i32, %c0_i32_0 : i32, i32
  }
  func.func @transform_3(%arg0: i32) -> (i32, i32) {
    %c0_i32 = arith.constant 0 : i32
    %c0_i32_0 = arith.constant 0 : i32
    %c0_i32_1 = arith.constant 0 : i32
    return %c0_i32, %c0_i32_0 : i32, i32
  }
  func.func @transform_4(%arg0: i32) -> (i32, i32) {
    %c0_i32 = arith.constant 0 : i32
    %c0_i32_0 = arith.constant 0 : i32
    %c0_i32_1 = arith.constant 0 : i32
    return %c0_i32, %c0_i32_0 : i32, i32
  }
  func.func @transform_5(%arg0: i32) -> (i32, i32) {
    %c0_i32 = arith.constant 0 : i32
    %c0_i32_0 = arith.constant 0 : i32
    %c0_i32_1 = arith.constant 0 : i32
    return %c0_i32, %c0_i32_0 : i32, i32
  }
  func.func @transform_6(%arg0: i32) -> (i32, i32) {
    %c0_i32 = arith.constant 0 : i32
    %c0_i32_0 = arith.constant 0 : i32
    %c0_i32_1 = arith.constant 0 : i32
    return %c0_i32, %c0_i32_0 : i32, i32
  }
  func.func @transform_7(%arg0: i32) -> (i32, i32) {
    %c0_i32 = arith.constant 0 : i32
    %c0_i32_0 = arith.constant 0 : i32
    return %arg0, %c0_i32 : i32, i32
  }
}

</mosaic_0001>

<llo_original>
// kernel: _lambda_.1
$region0: #{_lambda_.1}
  #allocation0 [shape = 'u32[]', space=smem, size = 0x4, offset = 0x4, fixed_abs, tag = 'smem constant byte address 0x4 - core index']
  #allocation1 [shape = 'u32[72,128]{1,0:T(1,128)}', space=vmem, size = 0x9000, scoped, tag = 'internal scratch']
  %s0 = inlined_call_operand.hbm [shape: f32[8,16], index: 0, kind: input, shape index: {}]
  %s1 = inlined_call_operand.hbm [shape: f32[16,128], index: 1, kind: input, shape index: {}]
  %s2 = inlined_call_operand.hbm [shape: f32[1,128], index: 2, kind: input, shape index: {}]
  %s3 = inlined_call_operand.hbm [shape: f32[128,128], index: 3, kind: input, shape index: {}]
  %s4 = inlined_call_operand.vmem [shape: f32[1,128], index: 4, kind: input, shape index: {}]
  %s5 = inlined_call_operand.hbm [shape: f32[128,4], index: 5, kind: input, shape index: {}]
  %s6 = inlined_call_operand.vmem [shape: f32[1,4], index: 6, kind: input, shape index: {}]
  %s7 = inlined_call_operand.vmem [shape: f32[8,4], index: 7, kind: output, shape index: {}]
  %s8 = sld [smem:[#allocation0]]
  $region58: #{_lambda_.1} parent=0
    _
  %s10 = ssub.s32 1, %s8
  %s11 = scalar_select 0, %s10, %s8
  $region1: #{_lambda_.1} parent=0
    #allocation2 [shape = 'u8[4096]{0}', space=vmem, size = 0x1000, scoped, tag = 'input window, operand 0, single buffered']
    #allocation3 [shape = 's32[1]{0}', space=sflag, size = 0x4, scoped, tag = 'scoped memory for _lambda_.1']
    #allocation4 [shape = 'u8[8192]{0}', space=vmem, size = 0x2000, scoped, tag = 'input window, operand 1, single buffered']
    #allocation5 [shape = 's32[1]{0}', space=sflag, size = 0x4, scoped, tag = 'scoped memory for _lambda_.1']
    #allocation6 [shape = 'u8[512]{0}', space=vmem, size = 0x400, scoped, tag = 'input window, operand 2, single buffered']
    #allocation7 [shape = 'u8[65536]{0}', space=vmem, size = 0x10000, scoped, tag = 'input window, operand 3, single buffered']
    #allocation8 [shape = 's32[1]{0}', space=sflag, size = 0x4, scoped, tag = 'scoped memory for _lambda_.1']
    #allocation9 [shape = 'u8[65536]{0}', space=vmem, size = 0x10000, scoped, tag = 'input window, operand 5, single buffered']
    %12 = vsyncpa [#allocation3], 0
    %13 = vsyncpa [#allocation5], 0
    %14 = vsyncpa [#allocation8], 0
    // Predicated region
    $region2: #{_lambda_.1} parent=1 // pred_check
      _
    $region3: #{_lambda_.1} parent=1 // pred_check_branch
      %16 = sbr.rel (0) target = $region5
    $region4: #{_lambda_.1} parent=1 // pred_region
      %18 = vsyncadd [#allocation3], 0
      %s20 = sshll.u32 %s0, 4
      %s21 = int_to_ptr.hbm [resolvable:$true] %s20
      %s22 = sshll.u32 [#allocation2], 4
      %s23 = int_to_ptr.vmem [resolvable:$true] %s22
      %25 = dma.hbm_to_vmem [thread:$0]  %s21, 128, %s23, [#allocation3]
    $region5: #{_lambda_.1} parent=1 // pred_fallthru
      _
    // Predicated region
    $region6: #{_lambda_.1} parent=1 // pred_check
      _
    $region7: #{_lambda_.1} parent=1 // pred_check_branch
      %27 = sbr.rel (0) target = $region9
    $region8: #{_lambda_.1} parent=1 // pred_region
      %29 = vsyncadd [#allocation5], 0
      %s30 = sshll.u32 %s1, 4
      %s31 = int_to_ptr.hbm [resolvable:$true] %s30
      %s32 = sshll.u32 [#allocation4], 4
      %s33 = int_to_ptr.vmem [resolvable:$true] %s32
      %38 = dma.hbm_to_vmem [thread:$0]  %s31, 256, %s33, [#allocation5], 128, 128, 8
    $region9: #{_lambda_.1} parent=1 // pred_fallthru
      _
    // Predicated region
    $region10: #{_lambda_.1} parent=1 // pred_check
      _
    $region11: #{_lambda_.1} parent=1 // pred_check_branch
      %40 = sbr.rel (0) target = $region13
    $region12: #{_lambda_.1} parent=1 // pred_region
      %42 = vsyncadd [#allocation5], 0
      %s44 = sshll.u32 %s2, 4
      %s45 = int_to_ptr.hbm [resolvable:$true] %s44
      %s46 = sshll.u32 [#allocation6], 4
      %s47 = int_to_ptr.vmem [resolvable:$true] %s46
      %49 = dma.hbm_to_vmem [thread:$0]  %s45, 16, %s47, [#allocation5]
    $region13: #{_lambda_.1} parent=1 // pred_fallthru
      _
    // Predicated region
    $region14: #{_lambda_.1} parent=1 // pred_check
      _
    $region15: #{_lambda_.1} parent=1 // pred_check_branch
      %51 = sbr.rel (0) target = $region17
    $region16: #{_lambda_.1} parent=1 // pred_region
      %53 = vsyncadd [#allocation8], 0
      %s54 = sshll.u32 %s3, 4
      %s55 = int_to_ptr.hbm [resolvable:$true] %s54
      %s56 = sshll.u32 [#allocation7], 4
      %s57 = int_to_ptr.vmem [resolvable:$true] %s56
      %62 = dma.hbm_to_vmem [thread:$0]  %s55, 2048, %s57, [#allocation8], 128, 128, 8
    $region17: #{_lambda_.1} parent=1 // pred_fallthru
      _
    // Predicated region
    $region18: #{_lambda_.1} parent=1 // pred_check
      _
    $region19: #{_lambda_.1} parent=1 // pred_check_branch
      %64 = sbr.rel (0) target = $region21
    $region20: #{_lambda_.1} parent=1 // pred_region
      _
    $region21: #{_lambda_.1} parent=1 // pred_fallthru
      _
    // Predicated region
    $region22: #{_lambda_.1} parent=1 // pred_check
      _
    $region23: #{_lambda_.1} parent=1 // pred_check_branch
      %66 = sbr.rel (0) target = $region25
    $region24: #{_lambda_.1} parent=1 // pred_region
      %68 = vsyncadd [#allocation8], 0
      %s69 = sshll.u32 %s5, 4
      %s70 = int_to_ptr.hbm [resolvable:$true] %s69
      %s71 = sshll.u32 [#allocation9], 4
      %s72 = int_to_ptr.vmem [resolvable:$true] %s71
      %77 = dma.hbm_to_vmem [thread:$0]  %s70, 2048, %s72, [#allocation8], 128, 128, 8
    $region25: #{_lambda_.1} parent=1 // pred_fallthru
      _
    // Predicated region
    $region26: #{_lambda_.1} parent=1 // pred_check
      _
    $region27: #{_lambda_.1} parent=1 // pred_check_branch
      %79 = sbr.rel (0) target = $region29
    $region28: #{_lambda_.1} parent=1 // pred_region
      _
    $region29: #{_lambda_.1} parent=1 // pred_fallthru
      _
    // Predicated region
    $region30: #{_lambda_.1} parent=1 // pred_check
      _
    $region31: #{_lambda_.1} parent=1 // pred_check_branch
      %81 = sbr.rel (0) target = $region33
    $region32: #{_lambda_.1} parent=1 // pred_region
      %83 = dma.done [#allocation3], 128
    $region33: #{_lambda_.1} parent=1 // pred_fallthru
      _
    // Predicated region
    $region34: #{_lambda_.1} parent=1 // pred_check
      _
    $region35: #{_lambda_.1} parent=1 // pred_check_branch
      %85 = sbr.rel (0) target = $region37
    $region36: #{_lambda_.1} parent=1 // pred_region
      %87 = dma.done [#allocation5], 256
    $region37: #{_lambda_.1} parent=1 // pred_fallthru
      _
    // Predicated region
    $region38: #{_lambda_.1} parent=1 // pred_check
      _
    $region39: #{_lambda_.1} parent=1 // pred_check_branch
      %89 = sbr.rel (0) target = $region41
    $region40: #{_lambda_.1} parent=1 // pred_region
      %91 = dma.done [#allocation5], 16
    $region41: #{_lambda_.1} parent=1 // pred_fallthru
      _
    // Predicated region
    $region42: #{_lambda_.1} parent=1 // pred_check
      _
    $region43: #{_lambda_.1} parent=1 // pred_check_branch
      %93 = sbr.rel (0) target = $region45
    $region44: #{_lambda_.1} parent=1 // pred_region
      %95 = dma.done [#allocation8], 2048
    $region45: #{_lambda_.1} parent=1 // pred_fallthru
      _
    // Predicated region
    $region46: #{_lambda_.1} parent=1 // pred_check
      _
    $region47: #{_lambda_.1} parent=1 // pred_check_branch
      %97 = sbr.rel (0) target = $region49
    $region48: #{_lambda_.1} parent=1 // pred_region
      %99 = dma.done [#allocation8], 2048
    $region49: #{_lambda_.1} parent=1 // pred_fallthru
      _
    %v100 = vld [vmem:[#allocation2] sm:$0xff]
    %v101 = vld [vmem:[#allocation4] sm:$0xff]
    %v102 = vld [vmem:[#allocation4 + $0x8] sm:$0xff]
    %v103 = vld [vmem:[#allocation6] sm:$0x1]
    %v105 = vperm.slane %v103, 0
    %vm107 = vcmask 130048
    %v109 = vsel %vm107, %v100, 0
    %111 = vmatpush.msra.mxu0 0.0
    %112 = vmatpush.msra.mxu0 0.0
    %113 = vmatpush.msra.mxu0 0.0
    %114 = vmatpush.msra.mxu0 0.0
    %115 = vmatpush.msra.mxu0 0.0
    %116 = vmatpush.msra.mxu0 0.0
    %117 = vmatpush.msra.mxu0 0.0
    %118 = vmatpush.msra.mxu0 0.0
    %119 = vmatpush.msra.mxu0 0.0
    %120 = vmatpush.msra.mxu0 0.0
    %121 = vmatpush.msra.mxu0 0.0
    %122 = vmatpush.msra.mxu0 0.0
    %123 = vmatpush.msra.mxu0 0.0
    %124 = vmatpush.msra.mxu0 0.0
    %125 = vmatpush.msra.mxu0 %v102
    %126 = vmatpush.msra.mxu0 %v101
    %127 = vmatmul.f32.gmra.mxu0 %v109
    %v128 = vpop.f32.mrf.mxu0
    %v129 = vadd.f32 %v105, %v128
    %130 = vdwg.mxu0
    %v131 = vmax.f32 %v129, 0.0
    %v132 = vld [vmem:[#allocation7] sm:$0xff]
    %v133 = vld [vmem:[#allocation7 + $0x8] sm:$0xff]
    %v134 = vld [vmem:[#allocation7 + $0x10] sm:$0xff]
    %v135 = vld [vmem:[#allocation7 + $0x18] sm:$0xff]
    %v136 = vld [vmem:[#allocation7 + $0x20] sm:$0xff]
    %v137 = vld [vmem:[#allocation7 + $0x28] sm:$0xff]
    %v138 = vld [vmem:[#allocation7 + $0x30] sm:$0xff]
    %v139 = vld [vmem:[#allocation7 + $0x38] sm:$0xff]
    %v140 = vld [vmem:[#allocation7 + $0x40] sm:$0xff]
    %v141 = vld [vmem:[#allocation7 + $0x48] sm:$0xff]
    %v142 = vld [vmem:[#allocation7 + $0x50] sm:$0xff]
    %v143 = vld [vmem:[#allocation7 + $0x58] sm:$0xff]
    %v144 = vld [vmem:[#allocation7 + $0x60] sm:$0xff]
    %v145 = vld [vmem:[#allocation7 + $0x68] sm:$0xff]
    %v146 = vld [vmem:[#allocation7 + $0x70] sm:$0xff]
    %v147 = vld [vmem:[#allocation7 + $0x78] sm:$0xff]
    %v148 = vld [vmem:[%s4] sm:$0x1]
    %v150 = vperm.slane %v148, 0
    %152 = vmatpush.msra.mxu0 %v147
    %153 = vmatpush.msra.mxu0 %v146
    %154 = vmatpush.msra.mxu0 %v145
    %155 = vmatpush.msra.mxu0 %v144
    %156 = vmatpush.msra.mxu0 %v143
    %157 = vmatpush.msra.mxu0 %v142
    %158 = vmatpush.msra.mxu0 %v141
    %159 = vmatpush.msra.mxu0 %v140
    %160 = vmatpush.msra.mxu0 %v139
    %161 = vmatpush.msra.mxu0 %v138
    %162 = vmatpush.msra.mxu0 %v137
    %163 = vmatpush.msra.mxu0 %v136
    %164 = vmatpush.msra.mxu0 %v135
    %165 = vmatpush.msra.mxu0 %v134
    %166 = vmatpush.msra.mxu0 %v133
    %167 = vmatpush.msra.mxu0 %v132
    %168 = vmatmul.f32.gmra.mxu0 %v131
    %v169 = vpop.f32.mrf.mxu0
    %v170 = vadd.f32 %v150, %v169
    %171 = vdwg.mxu0
    %v172 = vmax.f32 %v170, 0.0
    %v173 = vld [vmem:[#allocation9] sm:$0xff]
    %v174 = vld [vmem:[#allocation9 + $0x8] sm:$0xff]
    %v175 = vld [vmem:[#allocation9 + $0x10] sm:$0xff]
    %v176 = vld [vmem:[#allocation9 + $0x18] sm:$0xff]
    %v177 = vld [vmem:[#allocation9 + $0x20] sm:$0xff]
    %v178 = vld [vmem:[#allocation9 + $0x28] sm:$0xff]
    %v179 = vld [vmem:[#allocation9 + $0x30] sm:$0xff]
    %v180 = vld [vmem:[#allocation9 + $0x38] sm:$0xff]
    %v181 = vld [vmem:[#allocation9 + $0x40] sm:$0xff]
    %v182 = vld [vmem:[#allocation9 + $0x48] sm:$0xff]
    %v183 = vld [vmem:[#allocation9 + $0x50] sm:$0xff]
    %v184 = vld [vmem:[#allocation9 + $0x58] sm:$0xff]
    %v185 = vld [vmem:[#allocation9 + $0x60] sm:$0xff]
    %v186 = vld [vmem:[#allocation9 + $0x68] sm:$0xff]
    %v187 = vld [vmem:[#allocation9 + $0x70] sm:$0xff]
    %v188 = vld [vmem:[#allocation9 + $0x78] sm:$0xff]
    %v189 = vld [vmem:[%s6] sm:$0x1]
    %v191 = vperm.slane %v189, 0
    %193 = vmatpush.msra.mxu0 %v188
    %194 = vmatpush.msra.mxu0 %v187
    %195 = vmatpush.msra.mxu0 %v186
    %196 = vmatpush.msra.mxu0 %v185
    %197 = vmatpush.msra.mxu0 %v184
    %198 = vmatpush.msra.mxu0 %v183
    %199 = vmatpush.msra.mxu0 %v182
    %200 = vmatpush.msra.mxu0 %v181
    %201 = vmatpush.msra.mxu0 %v180
    %202 = vmatpush.msra.mxu0 %v179
    %203 = vmatpush.msra.mxu0 %v178
    %204 = vmatpush.msra.mxu0 %v177
    %205 = vmatpush.msra.mxu0 %v176
    %206 = vmatpush.msra.mxu0 %v175
    %207 = vmatpush.msra.mxu0 %v174
    %208 = vmatpush.msra.mxu0 %v173
    %209 = vmatmul.f32.gmra.mxu0 %v172
    %v210 = vpop.f32.mrf.mxu0
    %v211 = vadd.f32 %v191, %v210
    %212 = vdwg.mxu0
    %vm213 = vcmask 31744
    %214 = vst.msk [vmem:[%s7] sm:$0xff] %vm213, %v211
    // Predicated region
    $region50: #{_lambda_.1} parent=1 // pred_check
      _
    $region51: #{_lambda_.1} parent=1 // pred_check_branch
      %216 = sbr.rel (0) target = $region53
    $region52: #{_lambda_.1} parent=1 // pred_region
      _
    $region53: #{_lambda_.1} parent=1 // pred_fallthru
      _
    // Predicated region
    $region54: #{_lambda_.1} parent=1 // pred_check
      _
    $region55: #{_lambda_.1} parent=1 // pred_check_branch
      %218 = sbr.rel (0) target = $region57
    $region56: #{_lambda_.1} parent=1 // pred_region
      _
    $region57: #{_lambda_.1} parent=1 // pred_fallthru
      _
    %219 = vsyncpa [#allocation3], 1
    %220 = vsyncpa [#allocation5], 1
    %221 = vsyncpa [#allocation8], 1

</llo_original>
